<compile_context>
chip_gen: v6e
topology: v6e:2x2x1
jax: 0.10.0
libtpu: 0.0.40
codegen_flags: <defaults>
</compile_context>

<pallas_src>
import functools

import jax
import jax.numpy as jnp
import numpy as np
from jax.experimental import pallas as pl
from jax.experimental.pallas import tpu as pltpu


def _focal_loss_kernel(x_ref, tgt_ref, o_ref, acc_ref, *,
                       gamma, a0, a1, samples_per_batch, tile_samples,
                       mask_needed):
    # x_ref   : (C, TSUB, 128)  logits (native dtype), classes on a leading axis
    # tgt_ref : (TSUB, 128)     int32 target class per sample
    # o_ref   : (1, 1, 1)       f32 per-batch-element partial loss sum
    # acc_ref : (TSUB, 128)     f32 VMEM scratch, per-position partial sums
    s = pl.program_id(1)
    n_s = pl.num_programs(1)

    @pl.when(s == 0)
    def _init():
        acc_ref[...] = jnp.zeros_like(acc_ref)

    x = x_ref[...].astype(jnp.float32)          # (C, TSUB, 128)
    tgt = tgt_ref[...]                          # (TSUB, 128) int32
    C = x.shape[0]

    # Numerically stable log-softmax over the (small, leading) class axis:
    # everything below is full-vreg elementwise VPU / EUP work.
    m = x[0]
    for c in range(1, C):
        m = jnp.maximum(m, x[c])                # (TSUB, 128)

    sumexp = jnp.zeros_like(m)
    x_t = jnp.zeros_like(m)                     # gathered shifted logit
    exp_t = jnp.zeros_like(m)                   # gathered exp(shifted logit)
    for c in range(C):
        xs_c = x[c] - m
        e_c = jnp.exp(xs_c)
        sumexp = sumexp + e_c
        sel = tgt == c
        x_t = jnp.where(sel, xs_c, x_t)
        exp_t = jnp.where(sel, e_c, exp_t)

    logpt = x_t - jnp.log(sumexp)               # (TSUB, 128)
    pt = exp_t / sumexp                         # reuses exp(xs); no second exp

    # at = alpha.gather(0, target); alpha = [a0, a1] as compile-time constants.
    at = jnp.where(tgt == 0, jnp.float32(a0), jnp.float32(a1))
    logpt = logpt * at

    # (1 - pt) ** gamma; gamma is a compile-time constant.
    one_m_pt = 1.0 - pt
    if float(gamma).is_integer() and gamma >= 0:
        focal = jnp.ones_like(pt)
        for _ in range(int(gamma)):             # unrolled integer power (VPU)
            focal = focal * one_m_pt
    else:
        focal = jnp.power(one_m_pt, gamma)

    loss = -focal * logpt                       # (TSUB, 128)

    if mask_needed:
        # Only the last spatial tile of each batch element can hold padding.
        @pl.when(s == n_s - 1)
        def _acc_masked():
            TSUB, L = loss.shape
            pos = (s * tile_samples
                   + jax.lax.broadcasted_iota(jnp.int32, (TSUB, L), 0) * L
                   + jax.lax.broadcasted_iota(jnp.int32, (TSUB, L), 1))
            acc_ref[...] += jnp.where(pos < samples_per_batch, loss, 0.0)

        @pl.when(s != n_s - 1)
        def _acc():
            acc_ref[...] += loss
    else:
        acc_ref[...] += loss

    @pl.when(s == n_s - 1)
    def _finalize():
        o_ref[...] = jnp.sum(acc_ref[...]).reshape(1, 1, 1)


def focal_loss(inputs, target, *, gamma=2.0, alpha=0.25, size_average=True):
    """Fused Pallas FocalLoss. inputs: (N, C, ...) or (M, C); target: int classes
    in {0, 1} (binary alpha table, as in the PyTorch module). Returns scalar f32."""
    x = inputs
    if x.ndim > 2:
        N, C = int(x.shape[0]), int(x.shape[1])
        x3 = x.reshape(N, C, -1)                     # contiguous, no copy
    else:
        # (M, C): classes on the last axis -> fall back to a small transpose.
        C = int(x.shape[1])
        N = 1
        x3 = jnp.transpose(x, (1, 0))[None]          # (1, C, M)
    HW = int(x3.shape[2])
    num_valid = N * HW
    t2 = target.reshape(N, HW).astype(jnp.int32)

    LANES = 128
    # Size the spatial tile so one logits block is ~2 MB (amortizes per-step
    # overhead) while staying far below scoped-VMEM limits on all chips.
    bytes_per_row = max(1, C * LANES * x3.dtype.itemsize)   # one (C, 1, 128) slab
    cand = ((2 << 20) // bytes_per_row) // 8 * 8
    TSUB_MAX = max(8, min(1024, cand))

    SUB = -(-HW // LANES)                    # 128-lane rows per batch element
    TSUB = min(TSUB_MAX, SUB)
    SUBp = -(-SUB // TSUB) * TSUB
    HWp = SUBp * LANES
    pad = HWp - HW
    if pad:
        x3 = jnp.pad(x3, ((0, 0), (0, 0), (0, pad)))
        t2 = jnp.pad(t2, ((0, 0), (0, pad)))         # padded samples masked in-kernel
    x4 = x3.reshape(N, C, SUBp, LANES)               # free contiguous reshape
    t4 = t2.reshape(N, SUBp, LANES)

    S = SUBp // TSUB
    kern = functools.partial(
        _focal_loss_kernel,
        gamma=float(gamma), a0=float(alpha), a1=float(1.0 - alpha),
        samples_per_batch=HW, tile_samples=TSUB * LANES,
        mask_needed=pad > 0)

    out = pl.pallas_call(
        kern,
        out_shape=jax.ShapeDtypeStruct((N, 1, 1), jnp.float32),
        grid=(N, S),
        in_specs=[
            # Logits: native layout, full-vreg (C, TSUB, 128) block per step.
            pl.BlockSpec((None, C, TSUB, LANES), lambda n, s: (n, 0, s, 0)),
            # Targets: (TSUB, 128) block per step.
            pl.BlockSpec((None, TSUB, LANES), lambda n, s: (n, s, 0)),
        ],
        # Per-batch-element partial sum; resident across the reduction axis s.
        out_specs=pl.BlockSpec((1, 1, 1), lambda n, s: (n, 0, 0)),
        scratch_shapes=[pltpu.VMEM((TSUB, LANES), jnp.float32)],
        compiler_params=pltpu.CompilerParams(
            dimension_semantics=("parallel", "arbitrary"),  # N sharded on v7x
            vmem_limit_bytes=32 * 1024 * 1024),
    )(x4, t4)

    total = jnp.sum(out)
    if size_average:
        total = total / jnp.float32(num_valid)
    return total


def _reference(inputs, target, *, gamma, alpha, size_average=True):
    """Pure-JAX reference matching FocalLoss.forward (for verification)."""
    x = inputs.astype(jnp.float32)
    if x.ndim > 2:
        N, C = x.shape[0], x.shape[1]
        xm = jnp.transpose(x.reshape(N, C, -1), (0, 2, 1)).reshape(-1, C)
    else:
        xm = x
    t = target.reshape(-1)
    logp = jax.nn.log_softmax(xm, axis=1)
    logpt = jnp.take_along_axis(logp, t[:, None], axis=1)[:, 0]
    pt = jnp.exp(logpt)
    alpha_vec = jnp.array([alpha, 1.0 - alpha], jnp.float32)
    at = alpha_vec[t]
    logpt = logpt * at
    loss = -1.0 * (1.0 - pt) ** gamma * logpt
    return loss.mean() if size_average else loss.sum()


if __name__ == "__main__":
    key = jax.random.PRNGKey(0)
    k1, k2, k3, k4, k5, k6 = jax.random.split(key, 6)

    # Test 1: module-like 4-D input, gamma=2, mean reduction.
    N, C, H, W = 2, 2, 16, 16
    x = jax.random.normal(k1, (N, C, H, W), jnp.float32)
    tgt = jax.random.randint(k2, (N, H, W), 0, C, jnp.int32)
    got = jax.block_until_ready(focal_loss(x, tgt, gamma=2.0, alpha=0.25))
    ref = _reference(x, tgt, gamma=2.0, alpha=0.25)
    np.testing.assert_allclose(np.asarray(got), np.asarray(ref),
                               rtol=1e-5, atol=1e-5)

    # Test 2: odd spatial size (exercises lane padding + last-tile mask),
    # non-integer gamma, sum reduction.
    x2 = jax.random.normal(k3, (2, 2, 7, 9), jnp.float32)
    t2 = jax.random.randint(k4, (2, 7, 9), 0, 2, jnp.int32)
    got2 = jax.block_until_ready(
        focal_loss(x2, t2, gamma=1.5, alpha=0.4, size_average=False))
    ref2 = _reference(x2, t2, gamma=1.5, alpha=0.4, size_average=False)
    np.testing.assert_allclose(np.asarray(got2), np.asarray(ref2),
                               rtol=1e-5, atol=1e-5)

    # Test 3: 2-D (M, C) input path.
    x3 = jax.random.normal(k5, (40, 2), jnp.float32)
    t3 = jax.random.randint(k6, (40,), 0, 2, jnp.int32)
    got3 = jax.block_until_ready(focal_loss(x3, t3, gamma=2.0, alpha=0.25))
    ref3 = _reference(x3, t3, gamma=2.0, alpha=0.25)
    np.testing.assert_allclose(np.asarray(got3), np.asarray(ref3),
                               rtol=1e-5, atol=1e-5)

    print("KERNEL_OK")
</pallas_src>

<mosaic_0001>
module attributes {stable_mosaic.version = 11 : i64} {
  func.func @_focal_loss_kernel(%arg0: i32, %arg1: i32, %arg2: memref<1x2x2x128xf32, #tpu.memory_space<vmem>>, %arg3: memref<1x2x128xi32, #tpu.memory_space<vmem>>, %arg4: memref<1x1x1xf32, #tpu.memory_space<vmem>>, %arg5: memref<2x128xf32, #tpu.memory_space<vmem>>) attributes {dimension_semantics = [#tpu.dimension_semantics<parallel>, #tpu.dimension_semantics<arbitrary>], iteration_bounds = array<i64: 2, 1>, scalar_prefetch = 0 : i64, scratch_operands = 1 : i64, tpu.core_type = #tpu.core_type<tc>, window_params = [{transform_indices = @transform_0, window_bounds = array<i64: 1, 2, 2, 128>}, {transform_indices = @transform_1, window_bounds = array<i64: 1, 2, 128>}, {transform_indices = @transform_2, window_bounds = array<i64: 1, 1, 1>}]} {
    %c0_i32 = arith.constant 0 : i32
    %0 = arith.cmpi eq, %arg1, %c0_i32 : i32
    %1 = arith.extui %0 : i1 to i32
    %c0_i32_0 = arith.constant 0 : i32
    %2 = arith.cmpi ne, %1, %c0_i32_0 : i32
    scf.if %2 {
      %cst_22 = arith.constant 0.000000e+00 : f32
      %56 = vector.broadcast %cst_22 : f32 to vector<2x128xf32>
      %c0_23 = arith.constant 0 : index
      %c0_24 = arith.constant 0 : index
      %57 = vector.load %arg5[%c0_23, %c0_24] : memref<2x128xf32, #tpu.memory_space<vmem>>, vector<2x128xf32>
      tpu.vector_store %arg5[%c0_23, %c0_24], %56 {strides = array<i32>} : memref<2x128xf32, #tpu.memory_space<vmem>>, vector<2x128xf32>,
    } else {
    }
    %c0 = arith.constant 0 : index
    %c0_1 = arith.constant 0 : index
    %c0_2 = arith.constant 0 : index
    %c0_3 = arith.constant 0 : index
    %3 = vector.load %arg2[%c0, %c0_1, %c0_2, %c0_3] : memref<1x2x2x128xf32, #tpu.memory_space<vmem>>, vector<1x2x2x128xf32>
    %4 = vector.shape_cast %3 : vector<1x2x2x128xf32> to vector<2x2x128xf32>
    %c0_4 = arith.constant 0 : index
    %c0_5 = arith.constant 0 : index
    %c0_6 = arith.constant 0 : index
    %5 = vector.load %arg3[%c0_4, %c0_5, %c0_6] : memref<1x2x128xi32, #tpu.memory_space<vmem>>, vector<1x2x128xi32>
    %6 = vector.shape_cast %5 : vector<1x2x128xi32> to vector<2x128xi32>
    %7 = vector.extract_strided_slice %4 {offsets = [0, 0, 0], sizes = [1, 2, 128], strides = [1, 1, 1]} : vector<2x2x128xf32> to vector<1x2x128xf32>
    %8 = vector.shape_cast %7 : vector<1x2x128xf32> to vector<2x128xf32>
    %9 = vector.extract_strided_slice %4 {offsets = [1, 0, 0], sizes = [1, 2, 128], strides = [1, 1, 1]} : vector<2x2x128xf32> to vector<1x2x128xf32>
    %10 = vector.shape_cast %9 : vector<1x2x128xf32> to vector<2x128xf32>
    %11 = arith.maximumf %8, %10 : vector<2x128xf32>
    %cst = arith.constant 0.000000e+00 : f32
    %12 = vector.broadcast %cst : f32 to vector<2x128xf32>
    %cst_7 = arith.constant 0.000000e+00 : f32
    %13 = vector.broadcast %cst_7 : f32 to vector<2x128xf32>
    %cst_8 = arith.constant 0.000000e+00 : f32
    %14 = vector.broadcast %cst_8 : f32 to vector<2x128xf32>
    %15 = vector.extract_strided_slice %4 {offsets = [0, 0, 0], sizes = [1, 2, 128], strides = [1, 1, 1]} : vector<2x2x128xf32> to vector<1x2x128xf32>
    %16 = vector.shape_cast %15 : vector<1x2x128xf32> to vector<2x128xf32>
    %17 = arith.subf %16, %11 : vector<2x128xf32>
    %18 = math.exp %17 : vector<2x128xf32>
    %19 = arith.addf %12, %18 : vector<2x128xf32>
    %c0_i32_9 = arith.constant 0 : i32
    %20 = vector.broadcast %c0_i32_9 : i32 to vector<2x128xi32>
    %21 = arith.cmpi eq, %6, %20 : vector<2x128xi32>
    %22 = arith.select %21, %17, %13 : vector<2x128xi1>, vector<2x128xf32>
    %23 = arith.select %21, %18, %14 : vector<2x128xi1>, vector<2x128xf32>
    %24 = vector.extract_strided_slice %4 {offsets = [1, 0, 0], sizes = [1, 2, 128], strides = [1, 1, 1]} : vector<2x2x128xf32> to vector<1x2x128xf32>
    %25 = vector.shape_cast %24 : vector<1x2x128xf32> to vector<2x128xf32>
    %26 = arith.subf %25, %11 : vector<2x128xf32>
    %27 = math.exp %26 : vector<2x128xf32>
    %28 = arith.addf %19, %27 : vector<2x128xf32>
    %c1_i32 = arith.constant 1 : i32
    %29 = vector.broadcast %c1_i32 : i32 to vector<2x128xi32>
    %30 = arith.cmpi eq, %6, %29 : vector<2x128xi32>
    %31 = arith.select %30, %26, %22 : vector<2x128xi1>, vector<2x128xf32>
    %32 = arith.select %30, %27, %23 : vector<2x128xi1>, vector<2x128xf32>
    %33 = math.log %28 : vector<2x128xf32>
    %34 = arith.subf %31, %33 : vector<2x128xf32>
    %35 = arith.divf %32, %28 : vector<2x128xf32>
    %c0_i32_10 = arith.constant 0 : i32
    %36 = vector.broadcast %c0_i32_10 : i32 to vector<2x128xi32>
    %37 = arith.cmpi eq, %6, %36 : vector<2x128xi32>
    %cst_11 = arith.constant 2.500000e-01 : f32
    %cst_12 = arith.constant 7.500000e-01 : f32
    %38 = vector.broadcast %cst_11 : f32 to vector<2x128xf32>
    %39 = vector.broadcast %cst_12 : f32 to vector<2x128xf32>
    %40 = arith.select %37, %38, %39 : vector<2x128xi1>, vector<2x128xf32>
    %41 = arith.mulf %34, %40 : vector<2x128xf32>
    %cst_13 = arith.constant 1.000000e+00 : f32
    %42 = vector.broadcast %cst_13 : f32 to vector<2x128xf32>
    %43 = arith.subf %42, %35 : vector<2x128xf32>
    %cst_14 = arith.constant 1.000000e+00 : f32
    %44 = vector.broadcast %cst_14 : f32 to vector<2x128xf32>
    %45 = arith.mulf %44, %43 : vector<2x128xf32>
    %46 = arith.mulf %45, %43 : vector<2x128xf32>
    %cst_15 = arith.constant 0.000000e+00 : f32
    %47 = vector.broadcast %cst_15 : f32 to vector<2x128xf32>
    %48 = arith.subf %47, %46 : vector<2x128xf32>
    %49 = arith.mulf %48, %41 : vector<2x128xf32>
    %c0_16 = arith.constant 0 : index
    %c0_17 = arith.constant 0 : index
    %50 = vector.load %arg5[%c0_16, %c0_17] : memref<2x128xf32, #tpu.memory_space<vmem>>, vector<2x128xf32>
    %51 = arith.addf %50, %49 : vector<2x128xf32>
    %c0_18 = arith.constant 0 : index
    %c0_19 = arith.constant 0 : index
    %52 = vector.load %arg5[%c0_18, %c0_19] : memref<2x128xf32, #tpu.memory_space<vmem>>, vector<2x128xf32>
    tpu.vector_store %arg5[%c0_18, %c0_19], %51 {strides = array<i32>} : memref<2x128xf32, #tpu.memory_space<vmem>>, vector<2x128xf32>,
    %c0_i32_20 = arith.constant 0 : i32
    %53 = arith.cmpi eq, %arg1, %c0_i32_20 : i32
    %54 = arith.extui %53 : i1 to i32
    %c0_i32_21 = arith.constant 0 : i32
    %55 = arith.cmpi ne, %54, %c0_i32_21 : i32
    scf.if %55 {
      %c0_22 = arith.constant 0 : index
      %c0_23 = arith.constant 0 : index
      %56 = vector.load %arg5[%c0_22, %c0_23] : memref<2x128xf32, #tpu.memory_space<vmem>>, vector<2x128xf32>
      %57 = vector.shape_cast %56 : vector<2x128xf32> to vector<1x2x128xf32>
      %cst_24 = arith.constant dense<0.000000e+00> : vector<1xf32>
      %58 = vector.multi_reduction <add>, %57, %cst_24 [1, 2] : vector<1x2x128xf32> to vector<1xf32>
      %59 = vector.shape_cast %58 : vector<1xf32> to vector<1x1x1xf32>
      %60 = vector.extract %59[0, 0, 0] : f32 from vector<1x1x1xf32>
      %61 = vector.broadcast %60 : f32 to vector<1x1x1xf32>
      %c0_25 = arith.constant 0 : index
      %c0_26 = arith.constant 0 : index
      %c0_27 = arith.constant 0 : index
      %62 = vector.load %arg4[%c0_25, %c0_26, %c0_27] : memref<1x1x1xf32, #tpu.memory_space<vmem>>, vector<1x1x1xf32>
      tpu.vector_store %arg4[%c0_25, %c0_26, %c0_27], %61 {strides = array<i32>} : memref<1x1x1xf32, #tpu.memory_space<vmem>>, vector<1x1x1xf32>,
    } else {
    }
    return
  }
  func.func @transform_0(%arg0: i32, %arg1: i32) -> (i32, i32, i32, i32) {
    %c0_i32 = arith.constant 0 : i32
    %c0_i32_0 = arith.constant 0 : i32
    %c0_i32_1 = arith.constant 0 : i32
    return %arg0, %c0_i32, %arg1, %c0_i32_0 : i32, i32, i32, i32
  }
  func.func @transform_1(%arg0: i32, %arg1: i32) -> (i32, i32, i32) {
    %c0_i32 = arith.constant 0 : i32
    %c0_i32_0 = arith.constant 0 : i32
    return %arg0, %arg1, %c0_i32 : i32, i32, i32
  }
  func.func @transform_2(%arg0: i32, %arg1: i32) -> (i32, i32, i32) {
    %c0_i32 = arith.constant 0 : i32
    %c0_i32_0 = arith.constant 0 : i32
    %c0_i32_1 = arith.constant 0 : i32
    return %arg0, %c0_i32, %c0_i32_0 : i32, i32, i32
  }
}

</mosaic_0001>

<llo_original>
// kernel: tpu_custom_call.1
$region0: #{tpu_custom_call.1}
  #allocation0 [shape = 'u32[]', space=smem, size = 0x4, offset = 0x4, fixed_abs, tag = 'smem constant byte address 0x4 - core index']
  #allocation1 [shape = 'u32[144,128]{1,0:T(1,128)}', space=vmem, size = 0x12000, scoped, tag = 'internal scratch']
  #allocation2 [shape = 'f32[2,128]{1,0:T(2,128)}', space=vmem, size = 0x400, scoped, tag = 'scratch operand']
  %s0 = inlined_call_operand.hbm [shape: f32[2,2,2,128], index: 0, kind: input, shape index: {}]
  %s1 = inlined_call_operand.hbm [shape: s32[2,2,128], index: 1, kind: input, shape index: {}]
  %s2 = inlined_call_operand.vmem [shape: f32[2,1,1], index: 2, kind: output, shape index: {}]
  %s3 = sld [smem:[#allocation0]]
  $region57: #{tpu_custom_call.1} parent=0
    _
  %s5 = ssub.s32 1, %s3
  %s6 = scalar_select 0, %s5, %s3
  $region1: #{tpu_custom_call.1} parent=0
    #allocation3 [shape = 'u8[4096]{0}', space=vmem, size = 0x1000, scoped, tag = 'input window, operand 0']
    #allocation4 [shape = 's32[2]{0}', space=sflag, size = 0x8, scoped, tag = 'scoped memory for tpu_custom_call.1']
    #allocation5 [shape = 'u8[2048]{0}', space=vmem, size = 0x800, scoped, tag = 'input window, operand 1']
    #allocation6 [shape = 's32[2]{0}', space=sflag, size = 0x8, scoped, tag = 'scoped memory for tpu_custom_call.1']
    %7 = vsyncpa [#allocation4], 0
    %s8 = scalar_lea.sflag [#allocation4], 1
    %9 = vsyncpa %s8, 0
    %10 = vsyncpa [#allocation6], 0
    %s11 = scalar_lea.sflag [#allocation6], 1
    %12 = vsyncpa %s11, 0
    loop: start=0, step=1, limit=4
    $region2: #{tpu_custom_call.1} parent=1 // loop_pre_header
      _
    $region3: #{tpu_custom_call.1} parent=1 // loop_header
      %s14 = sphi 0, %s18
      %p15 = scmp.ge.s32.totalorder %s14, 4
      %s21 = sphi 0, %s33
      %s22 = sphi 0, %s29
      %s23 = sphi 0, %s21
      %s24 = sphi 0, %s22
      %s25 = sphi 0, %s23
      %s26 = sphi 0, %s24
      %s38 = sphi 0, %s40
      %s41 = sphi 0, %s38
      %s42 = sphi 0, %s41
      %s58 = sphi 0, %s42
      %s66 = sphi 0, %s68
      %s69 = sphi 0, %s66
      %s70 = sphi 0, %s69
      %s86 = sphi 0, %s70
      %s92 = sphi 0, %s94
      %s95 = sphi 0, %s92
      %s96 = sphi 0, %s95
      %s112 = sphi 0, %s96
    $region4: #{tpu_custom_call.1} parent=1 // loop_header_branch
      %17 = sbr.rel (%p15) target = $region8
    $region5: #{tpu_custom_call.1} parent=1 // loop_body
      %s19 = ssub.s32 %s14, 1
      %s20 = ssub.s32 %s14, 2
      %s27 = sadd.s32 1, %s22
      %p28 = scmp.ge.s32.totalorder %s27, 1
      %s29 = scalar_select %p28, 0, %s27
      %s30 = sadd.s32 1, %s21
      %s31 = scalar_select %p28, %s30, %s21
      %p32 = scmp.ge.s32.totalorder %s31, 2
      %s33 = scalar_select %p32, 0, %s31
      %s34 = ssub.s32 %s21, %s33
      %s35 = ssub.s32 %s22, %s29
      %s36 = sor.u32 %s34, %s35
      %p37 = scmp.eq.s32.totalorder %s36, 0
      %s39 = sadd.s32 %s38, 1
      %s40 = scalar_select %p37, %s38, %s39
      %p43 = pneg %p37
      %p44 = scmp.eq.s32.totalorder %s14, 1
      %p45 = por %p43, %p44
      %p46 = scmp.ne.s32.totalorder %s38, %s41
      %p47 = scmp.eq.s32.totalorder %s14, 0
      %p48 = por %p46, %p47
      %p49 = scmp.ne.s32.totalorder %s38, %s41
      %p50 = scmp.eq.s32.totalorder %s19, 1
      %p51 = por %p49, %p50
      %p52 = scmp.ne.s32.totalorder %s41, %s42
      %p53 = scmp.eq.s32.totalorder %s19, 0
      %p54 = por %p52, %p53
      %p55 = scmp.ne.s32.totalorder %s41, %s42
      %p56 = scmp.eq.s32.totalorder %s20, 1
      %p57 = por %p55, %p56
      %p59 = scmp.ne.s32.totalorder %s42, %s58
      %p60 = scmp.eq.s32.totalorder %s20, 0
      %p61 = por %p59, %p60
      %s62 = ssub.s32 %s21, %s33
      %s63 = ssub.s32 %s22, %s29
      %s64 = sor.u32 %s62, %s63
      %p65 = scmp.eq.s32.totalorder %s64, 0
      %s67 = sadd.s32 %s66, 1
      %s68 = scalar_select %p65, %s66, %s67
      %p71 = pneg %p65
      %p72 = scmp.eq.s32.totalorder %s14, 1
      %p73 = por %p71, %p72
      %p74 = scmp.ne.s32.totalorder %s66, %s69
      %p75 = scmp.eq.s32.totalorder %s14, 0
      %p76 = por %p74, %p75
      %p77 = scmp.ne.s32.totalorder %s66, %s69
      %p78 = scmp.eq.s32.totalorder %s19, 1
      %p79 = por %p77, %p78
      %p80 = scmp.ne.s32.totalorder %s69, %s70
      %p81 = scmp.eq.s32.totalorder %s19, 0
      %p82 = por %p80, %p81
      %p83 = scmp.ne.s32.totalorder %s69, %s70
      %p84 = scmp.eq.s32.totalorder %s20, 1
      %p85 = por %p83, %p84
      %p87 = scmp.ne.s32.totalorder %s70, %s86
      %p88 = scmp.eq.s32.totalorder %s20, 0
      %p89 = por %p87, %p88
      %s90 = ssub.s32 %s21, %s33
      %p91 = scmp.eq.s32.totalorder %s90, 0
      %s93 = sadd.s32 %s92, 1
      %s94 = scalar_select %p91, %s92, %s93
      %p97 = pneg %p91
      %p98 = scmp.eq.s32.totalorder %s14, 1
      %p99 = por %p97, %p98
      %p100 = scmp.ne.s32.totalorder %s92, %s95
      %p101 = scmp.eq.s32.totalorder %s14, 0
      %p102 = por %p100, %p101
      %p103 = scmp.ne.s32.totalorder %s92, %s95
      %p104 = scmp.eq.s32.totalorder %s19, 1
      %p105 = por %p103, %p104
      %p106 = scmp.ne.s32.totalorder %s95, %s96
      %p107 = scmp.eq.s32.totalorder %s19, 0
      %p108 = por %p106, %p107
      %p109 = scmp.ne.s32.totalorder %s95, %s96
      %p110 = scmp.eq.s32.totalorder %s20, 1
      %p111 = por %p109, %p110
      %p113 = scmp.ne.s32.totalorder %s96, %s112
      %p114 = scmp.eq.s32.totalorder %s20, 0
      %p115 = por %p113, %p114
      %p116 = scmp.le.s32.totalorder 1, %s14
      %p117 = scmp.lt.s32.totalorder %s14, 3
      %p118 = pnand %p116, %p117
      %p119 = pneg %p118
      // Predicated region
      $region9: #{tpu_custom_call.1} parent=5 // pred_check
        _
      $region10: #{tpu_custom_call.1} parent=5 // pred_check_branch
        %121 = sbr.rel (%p118) target = $region12
      $region11: #{tpu_custom_call.1} parent=5 // pred_region
        %s122 = ssub.s32 %s14, 1
      $region12: #{tpu_custom_call.1} parent=5 // pred_fallthru
        _
      %p123 = scmp.lt.s32.totalorder %s14, 2
      // Predicated region
      $region13: #{tpu_custom_call.1} parent=5 // pred_check
        %p124 = pneg %p123
      $region14: #{tpu_custom_call.1} parent=5 // pred_check_branch
        %126 = sbr.rel (%p124) target = $region16
      $region15: #{tpu_custom_call.1} parent=5 // pred_region
        // Predicated region
        $region17: #{tpu_custom_call.1} parent=15 // pred_check
          %p127 = pneg %p48
        $region18: #{tpu_custom_call.1} parent=15 // pred_check_branch
          %129 = sbr.rel (%p127) target = $region20
        $region19: #{tpu_custom_call.1} parent=15 // pred_region
          %s130 = sand.u32 %s38, 1
          %s131 = scalar_lea.sflag [#allocation4], %s130
          %s132 = sand.u32 %s38, 1
          %s133 = smul.addr %s132, 4
          %s134 = scalar_lea.vmem [#allocation3], %s133
          %s136 = ssub.s32 64, 64
          %137 = vsyncadd %s131, %s136
          %s138 = smul.addr %s21, 2
          %s139 = sadd.s32 %s22, %s138
          %s140 = smul.addr %s139, 32
          %s141 = scalar_lea.hbm %s0, %s140
          %s142 = sshll.u32 %s134, 4
          %s143 = int_to_ptr.vmem [resolvable:$true] %s142
          %148 = dma.hbm_to_vmem [thread:$0]  %s141, 64, %s143, %s131, 32, 32, 2
        $region20: #{tpu_custom_call.1} parent=15 // pred_fallthru
          _
        // Predicated region
        $region21: #{tpu_custom_call.1} parent=15 // pred_check
          %p149 = pneg %p76
        $region22: #{tpu_custom_call.1} parent=15 // pred_check_branch
          %151 = sbr.rel (%p149) target = $region24
        $region23: #{tpu_custom_call.1} parent=15 // pred_region
          %s152 = sand.u32 %s66, 1
          %s153 = scalar_lea.sflag [#allocation6], %s152
          %s154 = sand.u32 %s66, 1
          %s155 = smul.addr %s154, 2
          %s156 = scalar_lea.vmem [#allocation5], %s155
          %s158 = ssub.s32 32, 32
          %159 = vsyncadd %s153, %s158
          %s160 = sadd.s32 %s22, %s21
          %s161 = smul.addr %s160, 32
          %s162 = scalar_lea.hbm %s1, %s161
          %s164 = sshll.u32 %s156, 4
          %s165 = int_to_ptr.vmem [resolvable:$true] %s164
          %167 = dma.hbm_to_vmem [thread:$0]  %s162, 32, %s165, %s153
        $region24: #{tpu_custom_call.1} parent=15 // pred_fallthru
          _
      $region16: #{tpu_custom_call.1} parent=5 // pred_fallthru
        _
      %p168 = scmp.le.s32.totalorder 1, %s14
      %p169 = scmp.lt.s32.totalorder %s14, 3
      %p170 = pnand %p168, %p169
      %p171 = pneg %p170
      // Predicated region
      $region25: #{tpu_custom_call.1} parent=5 // pred_check
        _
      $region26: #{tpu_custom_call.1} parent=5 // pred_check_branch
        %173 = sbr.rel (%p170) target = $region28
      $region27: #{tpu_custom_call.1} parent=5 // pred_region
        %s174 = ssub.s32 %s14, 1
        %s175 = sand.u32 %s41, 1
        %s176 = scalar_lea.sflag [#allocation4], %s175
        %s177 = sand.u32 %s41, 1
        %s178 = smul.addr %s177, 4
        %s179 = scalar_lea.vmem [#allocation3], %s178
        // Predicated region
        $region29: #{tpu_custom_call.1} parent=27 // pred_check
          %p180 = pneg %p54
        $region30: #{tpu_custom_call.1} parent=27 // pred_check_branch
          %182 = sbr.rel (%p180) target = $region32
        $region31: #{tpu_custom_call.1} parent=27 // pred_region
          %183 = dma.done %s176, 64
        $region32: #{tpu_custom_call.1} parent=27 // pred_fallthru
          _
        %s184 = sand.u32 %s69, 1
        %s185 = scalar_lea.sflag [#allocation6], %s184
        %s186 = sand.u32 %s69, 1
        %s187 = smul.addr %s186, 2
        %s188 = scalar_lea.vmem [#allocation5], %s187
        // Predicated region
        $region33: #{tpu_custom_call.1} parent=27 // pred_check
          %p189 = pneg %p82
        $region34: #{tpu_custom_call.1} parent=27 // pred_check_branch
          %191 = sbr.rel (%p189) target = $region36
        $region35: #{tpu_custom_call.1} parent=27 // pred_region
          %192 = dma.done %s185, 32
        $region36: #{tpu_custom_call.1} parent=27 // pred_fallthru
          _
        %s193 = sand.u32 %s41, 1
        %s194 = scalar_lea.sflag [#allocation4], %s193
        %s195 = sand.u32 %s41, 1
        %s196 = smul.addr %s195, 4
        %s197 = scalar_lea.vmem [#allocation3], %s196
        %p198 = pneg %p54
        %p199 = pneg %p51
        %s200 = sand.u32 %s69, 1
        %s201 = scalar_lea.sflag [#allocation6], %s200
        %s202 = sand.u32 %s69, 1
        %s203 = smul.addr %s202, 2
        %s204 = scalar_lea.vmem [#allocation5], %s203
        %p205 = pneg %p82
        %p206 = pneg %p79
        %p207 = pneg %p108
        %p208 = pneg %p105
        %p209 = scmp.lt.s32.totalorder %s23, 1
        %s210 = scalar_select %p209, %s23, 1
        %s211 = scalar_lea.vmem %s2, %s210
        %p212 = scmp.lt.s32.totalorder %s23, 1
        %s213 = scalar_select %p212, %s23, 1
        %s214 = scalar_lea.vmem %s2, %s213
        %p215 = scmp.eq.s32.totalorder %s24, 0
        // Predicated region
        $region37: #{tpu_custom_call.1} parent=27 // pred_check
          %p216 = pneg %p215
        $region38: #{tpu_custom_call.1} parent=27 // pred_check_branch
          %218 = sbr.rel (%p216) target = $region40
        $region39: #{tpu_custom_call.1} parent=27 // pred_region
          %219 = vst [vmem:[#allocation2] sm:$0x3] 0.0
        $region40: #{tpu_custom_call.1} parent=27 // pred_fallthru
          _
        %v220 = vld [vmem:[%s179] sm:$0x3]
        %v221 = vld [vmem:[%s179 + $0x2] sm:$0x3]
        %v222 = vld [vmem:[%s188] sm:$0x3]
        %v223 = vmax.f32 %v220, %v221
        %v224 = vsub.f32 %v220, %v223
        %v225 = vmul.f32 %v224, 1.442695
        %v226 = vpow.pop %v225
        %v227 = vadd.f32 %v226, 0.0
        %vm228 = vcmp.eq.s32.totalorder %v222, 0
        %v229 = vsel %vm228, %v224, 0.0
        %v230 = vsel %vm228, %v226, 0.0
        %v231 = vsub.f32 %v221, %v223
        %v232 = vmul.f32 %v231, 1.442695
        %v233 = vpow.pop %v232
        %v234 = vadd.f32 %v227, %v233
        %vm235 = vcmp.eq.s32.totalorder %v222, 1
        %v236 = vsel %vm235, %v231, %v229
        %v237 = vsel %vm235, %v233, %v230
        %v238 = vlog2.pop %v234
        %v239 = vmul.f32 %v238, 0.6931472
        %v240 = vsub.f32 %v236, %v239
        %v241 = vrcp.pop %v234
        %v242 = vmul.f32 %v237, %v241
        %v243 = vsel %vm228, 0.25, 0.75
        %v244 = vmul.f32 %v240, %v243
        %v245 = vsub.f32 1.0, %v242
        %v246 = vmul.f32 %v245, %v245
        %v247 = vsub.f32 0.0, %v246
        %v248 = vmul.f32 %v247, %v244
        %v249 = vld [vmem:[#allocation2] sm:$0x3]
        %v250 = vadd.f32 %v249, %v248
        %251 = vst [vmem:[#allocation2] sm:$0x3] %v250
        // Predicated region
        $region41: #{tpu_custom_call.1} parent=27 // pred_check
          %p252 = pneg %p215
        $region42: #{tpu_custom_call.1} parent=27 // pred_check_branch
          %254 = sbr.rel (%p252) target = $region44
        $region43: #{tpu_custom_call.1} parent=27 // pred_region
          %v255 = vld [vmem:[#allocation2] sm:$0x3]
          %vm256 = vcmask 1041408
          %v257 = vsel %vm256, %v255, 0.0
          %258 = vadd.xlane.f32.xlu0 %v257
          %v259 = vpop.xlane.xlu0 %258
          %v260 = vrot.slane %v259, 4
          %v261 = vadd.f32 %v259, %v260
          %v262 = vrot.slane %v261, 2
          %v263 = vadd.f32 %v261, %v262
          %v264 = vrot.slane %v263, 1
          %v265 = vadd.f32 %v263, %v264
          %s266 = vtos %v265
          %v267 = vstv %s266
          %vm268 = vcmask 0
          %269 = vst.msk [vmem:[%s214] sm:$0x1] %vm268, %v267
        $region44: #{tpu_custom_call.1} parent=27 // pred_fallthru
          _
        %p270 = scmp.lt.s32.totalorder %s23, 1
        %s271 = scalar_select %p270, %s23, 1
        %s272 = scalar_lea.vmem %s2, %s271
        // Predicated region
        $region45: #{tpu_custom_call.1} parent=27 // pred_check
          %p273 = pneg %p105
        $region46: #{tpu_custom_call.1} parent=27 // pred_check_branch
          %275 = sbr.rel (%p273) target = $region48
        $region47: #{tpu_custom_call.1} parent=27 // pred_region
          _
        $region48: #{tpu_custom_call.1} parent=27 // pred_fallthru
          _
      $region28: #{tpu_custom_call.1} parent=5 // pred_fallthru
        _
      %p276 = scmp.le.s32.totalorder 2, %s14
      // Predicated region
      $region49: #{tpu_custom_call.1} parent=5 // pred_check
        %p277 = pneg %p276
      $region50: #{tpu_custom_call.1} parent=5 // pred_check_branch
        %279 = sbr.rel (%p277) target = $region52
      $region51: #{tpu_custom_call.1} parent=5 // pred_region
        %s280 = ssub.s32 %s14, 2
        // Predicated region
        $region53: #{tpu_custom_call.1} parent=51 // pred_check
          %p281 = pneg %p111
        $region54: #{tpu_custom_call.1} parent=51 // pred_check_branch
          %283 = sbr.rel (%p281) target = $region56
        $region55: #{tpu_custom_call.1} parent=51 // pred_region
          %p284 = scmp.lt.s32.totalorder %s25, 1
          %s285 = scalar_select %p284, %s25, 1
          %s286 = scalar_lea.vmem %s2, %s285
        $region56: #{tpu_custom_call.1} parent=51 // pred_fallthru
          _
      $region52: #{tpu_custom_call.1} parent=5 // pred_fallthru
        _
    $region6: #{tpu_custom_call.1} parent=1 // loop_footer
      %s18 = sadd.s32 1, %s14
    $region7: #{tpu_custom_call.1} parent=1 // loop_footer_branch
      %13 = sbr.rel target = $region3
    $region8: #{tpu_custom_call.1} parent=1 // loop_exit
      _
    %287 = vsyncpa [#allocation4], 1
    %s288 = scalar_lea.sflag [#allocation4], 1
    %289 = vsyncpa %s288, 1
    %290 = vsyncpa [#allocation6], 1
    %s291 = scalar_lea.sflag [#allocation6], 1
    %292 = vsyncpa %s291, 1

</llo_original>
